<compile_context>
chip_gen: v7x
topology: tpu7x:2x2x1
jax: 0.10.0
libtpu: 0.0.40
codegen_flags: <defaults>
</compile_context>

<pallas_src>
import math
from functools import partial

import jax
import jax.numpy as jnp
from jax import lax
from jax.experimental import pallas as pl
from jax.experimental.pallas import tpu as pltpu

EPS = 1e-5
_SUBLANE = 8
_TM_MAX = 1024                 # rows per M tile (4 MiB f32 block at td=1024)
_TD_MAX = 1024                 # features per D tile (multiple of 128)
_VMEM_CAP = 48 * 1024 * 1024   # scoped-VMEM cap: safe on v7x (64 MiB phys)
_FUSED_MAX_ELEMS = 1 << 20     # fused single-call path if m*d <= 1M elements


def _round_up(x, m):
    return ((x + m - 1) // m) * m


# --------------------------------------------------------------------------
# Fused small-input kernel: whole x resident in VMEM, stats + normalize in
# one pass (no second HBM read of x).
# --------------------------------------------------------------------------
def _fused_kernel(x_ref, g_ref, b_ref, o_ref, *, inv_count, eps):
    x = x_ref[...].astype(jnp.float32)
    s = jnp.sum(x, axis=0, keepdims=True)
    sq = jnp.sum(x * x, axis=0, keepdims=True)
    mean = s * inv_count
    var = jnp.maximum(sq * inv_count - mean * mean, 0.0)
    scale = g_ref[...].astype(jnp.float32) * lax.rsqrt(var + eps)
    shift = b_ref[...].astype(jnp.float32) - mean * scale
    o_ref[...] = (x * scale + shift).astype(o_ref.dtype)


# --------------------------------------------------------------------------
# Pass 1 (tiled path): per-feature partial sums.
#   grid = (nc, nd, nm_c): M chunks (parallel), D tiles (parallel),
#                          M tiles within chunk (reduction, innermost).
#   Output rows [16c, 16c+16): rows 0..7 = per-sublane sum(x) partials,
#                              rows 8..15 = per-sublane sum(x*x) partials.
#   The ragged / beyond-the-end tiles are masked by global row index.
# --------------------------------------------------------------------------
def _stats_kernel(x_ref, out_ref, sum_ref, sq_ref, *, m_rows, tm):
    c = pl.program_id(0)
    i = pl.program_id(2)
    n_i = pl.num_programs(2)

    @pl.when(i == 0)
    def _():
        sum_ref[...] = jnp.zeros_like(sum_ref)
        sq_ref[...] = jnp.zeros_like(sq_ref)

    i_global = c * n_i + i          # logical (unclamped) M-tile index
    row0 = i_global * tm

    def _accumulate(x):
        # (tm, td) -> (tm//8, 8, td): aligned with vreg tiling, so the sum
        # over axis 0 is pure VALU adds (no per-step cross-sublane reduce).
        xr = x.reshape(tm // 8, _SUBLANE, x.shape[-1])
        sum_ref[...] += jnp.sum(xr, axis=0)
        sq_ref[...] += jnp.sum(xr * xr, axis=0)

    @pl.when(row0 + tm <= m_rows)            # fully in-bounds tile: no mask
    def _():
        _accumulate(x_ref[...].astype(jnp.float32))

    @pl.when(row0 + tm > m_rows)             # ragged / fully-OOB tile: mask
    def _():
        x = x_ref[...].astype(jnp.float32)
        rows = lax.broadcasted_iota(jnp.int32, x.shape, 0) + row0
        _accumulate(jnp.where(rows < m_rows, x, 0.0))

    @pl.when(i == n_i - 1)
    def _():
        out_ref[0:8, :] = sum_ref[...]
        out_ref[8:16, :] = sq_ref[...]


# --------------------------------------------------------------------------
# Pass 2 (tiled path): y = x * scale + shift per (tm, td) tile.
# --------------------------------------------------------------------------
def _normalize_kernel(stats_ref, x_ref, o_ref):
    scale = stats_ref[0:1, :]
    shift = stats_ref[1:2, :]
    o_ref[...] = (x_ref[...].astype(jnp.float32) * scale + shift).astype(o_ref.dtype)


def batch_norm_1d(x_flat, gamma, beta, *, eps=EPS):
    """BatchNorm1d (training-mode statistics) on an (M, D) array via Pallas."""
    m, d = x_flat.shape
    itemsize = x_flat.dtype.itemsize

    # ------------------ fused fast path: x fits in VMEM --------------------
    if m * d <= _FUSED_MAX_ELEMS:
        vmem_limit = int(min(_VMEM_CAP, 8 * m * d * 4 + (16 << 20)))
        return pl.pallas_call(
            partial(_fused_kernel, inv_count=1.0 / float(m), eps=eps),
            out_shape=jax.ShapeDtypeStruct((m, d), x_flat.dtype),
            compiler_params=pltpu.CompilerParams(vmem_limit_bytes=vmem_limit),
        )(x_flat, gamma.reshape(1, d), beta.reshape(1, d))

    # ------------------ tiled two-pass path ---------------------------------
    if d <= _TD_MAX:
        td, nd = d, 1                       # full-dim block (lane rules allow it)
    else:
        td = _TD_MAX                        # multiple of 128 -> lane-dense
        nd = pl.cdiv(d, td)
    dp = nd * td                            # stats array width (tiny padding only)

    tm = min(_TM_MAX, _round_up(m, _SUBLANE))
    nm = pl.cdiv(m, tm)
    nc = 2 if nm >= 2 else 1                # M chunks -> parallel axis (v7x 2 TCs)
    nm_c = pl.cdiv(nm, nc)

    blk = tm * td
    # 2x in + 2x out double-buffered blocks + f32 temporaries + headroom.
    vmem_limit = int(min(_VMEM_CAP, 4 * blk * itemsize + 4 * blk * 4 + (8 << 20)))

    # ---- pass 1: per-sublane partial sums per (chunk, D tile) --------------
    stats_raw = pl.pallas_call(
        partial(_stats_kernel, m_rows=m, tm=tm),
        out_shape=jax.ShapeDtypeStruct((nc * 16, dp), jnp.float32),
        grid_spec=pltpu.PrefetchScalarGridSpec(
            num_scalar_prefetch=0,
            grid=(nc, nd, nm_c),            # reduction axis innermost
            in_specs=[
                # Clamp to the last real M tile; beyond-the-end steps re-read
                # it and are fully masked in-kernel (contribute zero).
                pl.BlockSpec(
                    (tm, td),
                    lambda c, j, i: (jnp.minimum(c * nm_c + i, nm - 1), j),
                ),
            ],
            out_specs=pl.BlockSpec((16, td), lambda c, j, i: (c, j)),
            scratch_shapes=[
                pltpu.VMEM((_SUBLANE, td), jnp.float32),   # per-sublane sum(x)
                pltpu.VMEM((_SUBLANE, td), jnp.float32),   # per-sublane sum(x*x)
            ],
        ),
        compiler_params=pltpu.CompilerParams(
            dimension_semantics=("parallel", "parallel", "arbitrary"),
            vmem_limit_bytes=vmem_limit,
        ),
    )(x_flat)

    # ---- tiny jnp epilogue: fold chunks/sublanes + gamma/beta --------------
    p = stats_raw.reshape(nc, 2, _SUBLANE, dp)[..., :d]
    totals = p.sum(axis=(0, 2))                       # (2, d): [sum, sum(x^2)]
    mean = totals[0] / float(m)
    var = jnp.maximum(totals[1] / float(m) - mean * mean, 0.0)
    scale = gamma.astype(jnp.float32) * lax.rsqrt(var + eps)
    shift = beta.astype(jnp.float32) - mean * scale
    stats = jnp.stack([scale, shift], axis=0)         # (2, d)
    if dp != d:
        stats = jnp.pad(stats, ((0, 0), (0, dp - d)))  # tiny, zeros are inert

    # ---- pass 2: normalize (pure streaming, fully pipelined) ---------------
    y = pl.pallas_call(
        _normalize_kernel,
        out_shape=jax.ShapeDtypeStruct((m, d), x_flat.dtype),
        grid_spec=pltpu.PrefetchScalarGridSpec(
            num_scalar_prefetch=0,
            grid=(nd, nm),
            in_specs=[
                pl.BlockSpec((2, td), lambda j, i: (0, j)),    # resident stats
                pl.BlockSpec((tm, td), lambda j, i: (i, j)),
            ],
            out_specs=pl.BlockSpec((tm, td), lambda j, i: (i, j)),
        ),
        compiler_params=pltpu.CompilerParams(
            dimension_semantics=("parallel", "parallel"),
            vmem_limit_bytes=vmem_limit,
        ),
    )(stats, x_flat)
    return y


class Normalization:
    """JAX/Pallas port of the PyTorch Normalization module ('batch' mode)."""

    def __init__(self, embed_dim, key, normalization="batch"):
        assert normalization == "batch", "only 'batch' implemented here"
        # TODO(synk): 'instance' (nn.InstanceNorm1d) branch not implemented.
        # TODO(synk): running_mean/running_var momentum tracking (eval mode)
        #             is not implemented; this matches training-mode output.
        self.embed_dim = embed_dim
        stdv = 1.0 / math.sqrt(embed_dim)  # param.size(-1) == embed_dim
        k_w, k_b = jax.random.split(key)
        self.weight = jax.random.uniform(
            k_w, (embed_dim,), jnp.float32, minval=-stdv, maxval=stdv
        )
        self.bias = jax.random.uniform(
            k_b, (embed_dim,), jnp.float32, minval=-stdv, maxval=stdv
        )

    def __call__(self, x):
        # x: (..., D) — BatchNorm1d path flattens all leading dims.
        orig_shape = x.shape
        d = orig_shape[-1]
        assert d == self.embed_dim
        x_flat = x.reshape(-1, d)
        y_flat = batch_norm_1d(x_flat, self.weight, self.bias)
        return y_flat.reshape(orig_shape)


def _reference_batchnorm(x, gamma, beta):
    # Pure-JAX reference matching torch BatchNorm1d in training mode.
    d = x.shape[-1]
    xf = x.reshape(-1, d).astype(jnp.float32)
    mean = jnp.mean(xf, axis=0, keepdims=True)
    var = jnp.mean((xf - mean) ** 2, axis=0, keepdims=True)
    y = (xf - mean) / jnp.sqrt(var + EPS) * gamma + beta
    return y.reshape(x.shape).astype(x.dtype)


if __name__ == "__main__":
    key = jax.random.PRNGKey(0)
    k1, k2, k3, k4 = jax.random.split(key, 4)

    # --- small case (fused single-call path), shapes implied by the module ---
    B, S, D = 2, 8, 32
    mod_small = Normalization(D, k1, normalization="batch")
    x_small = jax.random.normal(k2, (B, S, D), dtype=jnp.float32)
    y_small = jax.block_until_ready(mod_small(x_small))
    y_small_ref = _reference_batchnorm(x_small, mod_small.weight, mod_small.bias)
    assert y_small.shape == x_small.shape and y_small.dtype == x_small.dtype
    assert jnp.allclose(y_small, y_small_ref, atol=2e-5, rtol=2e-5)

    # --- larger case exercising the tiled two-pass path (ragged last M tile,
    #     chunked parallel stats + masked tail) -------------------------------
    B2, S2, D2 = 4, 515, 1024          # m = 2060 rows -> 3 M tiles, last partial
    mod_big = Normalization(D2, k3, normalization="batch")
    x_big = jax.random.normal(k4, (B2, S2, D2), dtype=jnp.float32)
    y_big = jax.block_until_ready(mod_big(x_big))
    y_big_ref = _reference_batchnorm(x_big, mod_big.weight, mod_big.bias)
    assert y_big.shape == x_big.shape and y_big.dtype == x_big.dtype
    assert jnp.allclose(y_big, y_big_ref, atol=2e-5, rtol=2e-5)

    print("KERNEL_OK")
</pallas_src>

<mosaic_0001>
module attributes {stable_mosaic.version = 11 : i64} {
  func.func @_fused_kernel(%arg0: memref<16x32xf32, #tpu.memory_space<vmem>>, %arg1: memref<1x32xf32, #tpu.memory_space<vmem>>, %arg2: memref<1x32xf32, #tpu.memory_space<vmem>>, %arg3: memref<16x32xf32, #tpu.memory_space<vmem>>) attributes {dimension_semantics = [], scalar_prefetch = 0 : i64, scratch_operands = 0 : i64, tpu.core_type = #tpu.core_type<tc>} {
    %c0 = arith.constant 0 : index
    %c0_0 = arith.constant 0 : index
    %0 = vector.load %arg0[%c0, %c0_0] : memref<16x32xf32, #tpu.memory_space<vmem>>, vector<16x32xf32>
    %cst = arith.constant dense<0.000000e+00> : vector<32xf32>
    %1 = vector.multi_reduction <add>, %0, %cst [0] : vector<16x32xf32> to vector<32xf32>
    %2 = vector.shape_cast %1 : vector<32xf32> to vector<1x32xf32>
    %3 = arith.mulf %0, %0 : vector<16x32xf32>
    %cst_1 = arith.constant dense<0.000000e+00> : vector<32xf32>
    %4 = vector.multi_reduction <add>, %3, %cst_1 [0] : vector<16x32xf32> to vector<32xf32>
    %5 = vector.shape_cast %4 : vector<32xf32> to vector<1x32xf32>
    %cst_2 = arith.constant 6.250000e-02 : f32
    %6 = vector.broadcast %cst_2 : f32 to vector<1x32xf32>
    %7 = arith.mulf %2, %6 : vector<1x32xf32>
    %cst_3 = arith.constant 6.250000e-02 : f32
    %8 = vector.broadcast %cst_3 : f32 to vector<1x32xf32>
    %9 = arith.mulf %5, %8 : vector<1x32xf32>
    %10 = arith.mulf %7, %7 : vector<1x32xf32>
    %11 = arith.subf %9, %10 : vector<1x32xf32>
    %cst_4 = arith.constant 0.000000e+00 : f32
    %12 = vector.broadcast %cst_4 : f32 to vector<1x32xf32>
    %13 = arith.maximumf %11, %12 : vector<1x32xf32>
    %c0_5 = arith.constant 0 : index
    %c0_6 = arith.constant 0 : index
    %14 = vector.load %arg1[%c0_5, %c0_6] : memref<1x32xf32, #tpu.memory_space<vmem>>, vector<1x32xf32>
    %cst_7 = arith.constant 9.99999974E-6 : f32
    %15 = vector.broadcast %cst_7 : f32 to vector<1x32xf32>
    %16 = arith.addf %13, %15 : vector<1x32xf32>
    %17 = math.rsqrt %16 : vector<1x32xf32>
    %18 = arith.mulf %14, %17 : vector<1x32xf32>
    %c0_8 = arith.constant 0 : index
    %c0_9 = arith.constant 0 : index
    %19 = vector.load %arg2[%c0_8, %c0_9] : memref<1x32xf32, #tpu.memory_space<vmem>>, vector<1x32xf32>
    %20 = arith.mulf %7, %18 : vector<1x32xf32>
    %21 = arith.subf %19, %20 : vector<1x32xf32>
    %22 = vector.broadcast %18 : vector<1x32xf32> to vector<16x32xf32>
    %23 = arith.mulf %0, %22 : vector<16x32xf32>
    %24 = vector.broadcast %21 : vector<1x32xf32> to vector<16x32xf32>
    %25 = arith.addf %23, %24 : vector<16x32xf32>
    %c0_10 = arith.constant 0 : index
    %c0_11 = arith.constant 0 : index
    %26 = vector.load %arg3[%c0_10, %c0_11] : memref<16x32xf32, #tpu.memory_space<vmem>>, vector<16x32xf32>
    tpu.vector_store %arg3[%c0_10, %c0_11], %25 {strides = array<i32>} : memref<16x32xf32, #tpu.memory_space<vmem>>, vector<16x32xf32>,
    return
  }
}

</mosaic_0001>

<llo_original>
// kernel: tpu_custom_call.1
$region0: #{tpu_custom_call.1}
  #allocation0 [shape = 'u32[]', space=smem, size = 0x4, offset = 0x4, fixed_abs, tag = 'smem constant byte address 0x4 - core index']
  #allocation1 [shape = 'u32[144,128]{1,0:T(1,128)}', space=vmem, size = 0x12000, scoped, tag = 'internal scratch']
  %s0 = inlined_call_operand.hbm [shape: f32[16,32], index: 0, kind: input, shape index: {}]
  %s1 = inlined_call_operand.vmem [shape: f32[1,32], index: 1, kind: input, shape index: {}]
  %s2 = inlined_call_operand.vmem [shape: f32[1,32], index: 2, kind: input, shape index: {}]
  %s3 = inlined_call_operand.hbm [shape: f32[16,32], index: 3, kind: output, shape index: {}]
  %s4 = sld [smem:[#allocation0]]
  $region26: #{tpu_custom_call.1} parent=0
    _
  %s6 = ssub.s32 1, %s4
  %s7 = scalar_select 0, %s6, %s4
  $region1: #{tpu_custom_call.1} parent=0
    #allocation2 [shape = 'u8[8192]{0}', space=vmem, size = 0x2000, scoped, tag = 'input window, operand 0, single buffered']
    #allocation3 [shape = 's32[1]{0}', space=sflag, size = 0x4, scoped, tag = 'scoped memory for tpu_custom_call.1']
    #allocation4 [shape = 's32[1]{0}', space=sflag, size = 0x4, scoped, tag = 'scoped memory for tpu_custom_call.1']
    #allocation5 [shape = 'u8[8192]{0}', space=vmem, size = 0x2000, scoped, tag = 'output window, operand 0, single buffered']
    %8 = vsyncpa [#allocation3], 0
    %9 = vsyncpa [#allocation4], 0
    // Predicated region
    $region2: #{tpu_custom_call.1} parent=1 // pred_check
      _
    $region3: #{tpu_custom_call.1} parent=1 // pred_check_branch
      %11 = sbr.rel (0) target = $region5
    $region4: #{tpu_custom_call.1} parent=1 // pred_region
      %s13 = ssub.s32 256, 256
      %14 = vsyncadd [#allocation3], %s13
      %s15 = sshll.u32 [#allocation2], 4
      %s16 = int_to_ptr.vmem [resolvable:$true] %s15
      %21 = dma.hbm_to_vmem [thread:$0]  %s0, 256, %s16, [#allocation3], 128, 128, 8
    $region5: #{tpu_custom_call.1} parent=1 // pred_fallthru
      _
    // Predicated region
    $region6: #{tpu_custom_call.1} parent=1 // pred_check
      _
    $region7: #{tpu_custom_call.1} parent=1 // pred_check_branch
      %23 = sbr.rel (0) target = $region9
    $region8: #{tpu_custom_call.1} parent=1 // pred_region
      _
    $region9: #{tpu_custom_call.1} parent=1 // pred_fallthru
      _
    // Predicated region
    $region10: #{tpu_custom_call.1} parent=1 // pred_check
      _
    $region11: #{tpu_custom_call.1} parent=1 // pred_check_branch
      %25 = sbr.rel (0) target = $region13
    $region12: #{tpu_custom_call.1} parent=1 // pred_region
      _
    $region13: #{tpu_custom_call.1} parent=1 // pred_fallthru
      _
    // Predicated region
    $region14: #{tpu_custom_call.1} parent=1 // pred_check
      _
    $region15: #{tpu_custom_call.1} parent=1 // pred_check_branch
      %27 = sbr.rel (0) target = $region17
    $region16: #{tpu_custom_call.1} parent=1 // pred_region
      %28 = dma.done [#allocation3], 256
    $region17: #{tpu_custom_call.1} parent=1 // pred_fallthru
      _
    %v29 = vld [vmem:[#allocation2] sm:$0xff]
    %v30 = vld [vmem:[#allocation2 + $0x8] sm:$0xff]
    %vm31 = vcmask 261120
    %v32 = vsel %vm31, %v29, 0.0
    %v33 = vsel %vm31, %v30, 0.0
    %v34 = vadd.f32 %v32, %v33
    %v35 = vrot.slane %v34, 4
    %v36 = vadd.f32 %v34, %v35
    %v37 = vrot.slane %v36, 2
    %v38 = vadd.f32 %v36, %v37
    %v39 = vrot.slane %v38, 1
    %v40 = vadd.f32 %v38, %v39
    %v41 = vmul.f32 %v29, %v29
    %v42 = vmul.f32 %v30, %v30
    %v43 = vsel %vm31, %v41, 0.0
    %v44 = vsel %vm31, %v42, 0.0
    %v45 = vadd.f32 %v43, %v44
    %v46 = vrot.slane %v45, 4
    %v47 = vadd.f32 %v45, %v46
    %v48 = vrot.slane %v47, 2
    %v49 = vadd.f32 %v47, %v48
    %v50 = vrot.slane %v49, 1
    %v51 = vadd.f32 %v49, %v50
    %v52 = vmul.f32 %v40, 0.0625
    %v53 = vmul.f32 %v51, 0.0625
    %v54 = vmul.f32 %v52, %v52
    %v55 = vsub.f32 %v53, %v54
    %v56 = vmax.f32 %v55, 0.0
    %v57 = vld [vmem:[%s1] sm:$0x1]
    %v58 = vadd.f32 %v56, 1e-05
    %v59 = vrsqrt.pop %v58
    %v60 = vmul.f32 %v57, %v59
    %v61 = vld [vmem:[%s2] sm:$0x1]
    %v62 = vmul.f32 %v52, %v60
    %v63 = vsub.f32 %v61, %v62
    %v65 = vlaneseq
    %v66 = vshrl.u32 %v65, 7
    %v67 = vsub.s32 0, %v66
    %v68 = vrot.slane %v60, %v67
    %v70 = vmul.f32 %v29, %v68
    %v71 = vmul.f32 %v30, %v68
    %v73 = vlaneseq
    %v74 = vshrl.u32 %v73, 7
    %v75 = vsub.s32 0, %v74
    %v76 = vrot.slane %v63, %v75
    %v78 = vadd.f32 %v70, %v76
    %v79 = vadd.f32 %v71, %v76
    %80 = vst.msk [vmem:[#allocation5] sm:$0xff] %vm31, %v78
    %81 = vst.msk [vmem:[#allocation5 + $0x8] sm:$0xff] %vm31, %v79
    // Predicated region
    $region18: #{tpu_custom_call.1} parent=1 // pred_check
      _
    $region19: #{tpu_custom_call.1} parent=1 // pred_check_branch
      %83 = sbr.rel (0) target = $region21
    $region20: #{tpu_custom_call.1} parent=1 // pred_region
      %s85 = ssub.s32 256, 256
      %86 = vsyncadd [#allocation4], %s85
      %s87 = sshll.u32 [#allocation5], 4
      %s88 = int_to_ptr.vmem [resolvable:$true] %s87
      %93 = dma.vmem_to_hbm [thread:$0]  %s88, 256, %s3, [#allocation4], 128, 128, 8
    $region21: #{tpu_custom_call.1} parent=1 // pred_fallthru
      _
    // Predicated region
    $region22: #{tpu_custom_call.1} parent=1 // pred_check
      _
    $region23: #{tpu_custom_call.1} parent=1 // pred_check_branch
      %95 = sbr.rel (0) target = $region25
    $region24: #{tpu_custom_call.1} parent=1 // pred_region
      %96 = dma.done [#allocation4], 256
    $region25: #{tpu_custom_call.1} parent=1 // pred_fallthru
      _
    %97 = vsyncpa [#allocation3], 1
    %98 = vsyncpa [#allocation4], 1

</llo_original>
